<compile_context>
chip_gen: v7x
topology: tpu7x:2x2x1
jax: 0.10.0
libtpu: 0.0.40
codegen_flags: <defaults>
</compile_context>

<pallas_src>
import functools

import jax
import jax.numpy as jnp
from jax.experimental import pallas as pl
from jax.experimental.pallas import tpu as pltpu


LANE = 128
TILE_N_MAX = 2048     # rows of the flattened (B*T) axis per grid step
NEG_INF = -1e30


def _round_up(x, m):
    return (x + m - 1) // m * m


def _padded_dims(n, v):
    """Static tiling decisions (all Python ints under jit)."""
    v_pad = _round_up(v, LANE)
    n_pad = _round_up(max(n, 1), LANE)
    # Prefer >= 2 blocks (megacore on v7x) while keeping tiles <= TILE_N_MAX.
    half = _round_up(max(n_pad // 2, LANE), LANE)
    tile_n = min(TILE_N_MAX, half, n_pad)
    n_pad = _round_up(n_pad, tile_n)
    return n_pad, tile_n, v_pad


def prepare_table(table):
    """Pad the (V, V) embedding table once at parameter init.

    Rows are zero-padded to v_pad (never selected: idx < V); columns V..v_pad-1
    are set to -1e30 so padded vocab lanes are pre-masked for logsumexp.
    """
    v = table.shape[0]
    v_pad = _round_up(v, LANE)
    t = jnp.asarray(table, jnp.float32)
    t = jnp.pad(t, ((0, 0), (0, v_pad - v)), constant_values=NEG_INF)
    t = jnp.pad(t, ((0, v_pad - v), (0, 0)))
    return t


# --------------------------------------------------------------------------
# Kernels
# --------------------------------------------------------------------------

def _logits_loss_kernel(idx_ref, tgt_ref, table_ref, logits_ref, loss_ref):
    # idx_ref, tgt_ref : (1, 1, tile_n)     int32   VMEM (lane-dense tokens)
    # table_ref        : (v_pad, v_pad)     float32 VMEM (resident; cols>=V == -1e30)
    # logits_ref       : (tile_n, V)        float32 VMEM
    # loss_ref         : (1, 1)             float32 SMEM (per-block partial sum)
    v = logits_ref.shape[1]
    v_pad = table_ref.shape[0]

    idx = idx_ref[0]                                              # (1, tile_n)
    tgt = tgt_ref[0]                                              # (1, tile_n)
    sub = jax.lax.broadcasted_iota(jnp.int32, (v_pad, 1), 0)      # (v_pad, 1)

    onehot_t = (sub == idx).astype(jnp.float32)                   # (v_pad, tile_n)
    table = table_ref[...]                                        # (v_pad, v_pad)

    # Embedding lookup in output orientation (tokens on sublanes).
    logits = jax.lax.dot_general(
        onehot_t, table, (((0,), (0,)), ((), ())),
        preferred_element_type=jnp.float32)                       # (tile_n, v_pad)
    logits_ref[...] = logits[:, :v]

    # Cross-entropy partials in the lane-dense (tokens on lanes) orientation.
    logits_t = jax.lax.dot_general(
        table, onehot_t, (((0,), (0,)), ((), ())),
        preferred_element_type=jnp.float32)                       # (v_pad, tile_n)
    m = jnp.max(logits_t, axis=0, keepdims=True)                  # (1, tile_n)
    lse = m + jnp.log(jnp.sum(jnp.exp(logits_t - m), axis=0, keepdims=True))
    picked = jnp.sum(jnp.where(sub == tgt, logits_t, 0.0),
                     axis=0, keepdims=True)                       # (1, tile_n)
    valid = tgt >= 0                                              # padded rows carry tgt = -1
    loss_ref[0, 0] = jnp.sum(jnp.where(valid, lse - picked, 0.0))


def _logits_kernel(idx_ref, table_ref, logits_ref):
    # Inference path: logits only, no loss work.
    v = logits_ref.shape[1]
    v_pad = table_ref.shape[0]
    idx = idx_ref[0]
    sub = jax.lax.broadcasted_iota(jnp.int32, (v_pad, 1), 0)
    onehot_t = (sub == idx).astype(jnp.float32)
    logits = jax.lax.dot_general(
        onehot_t, table_ref[...], (((0,), (0,)), ((), ())),
        preferred_element_type=jnp.float32)
    logits_ref[...] = logits[:, :v]


def _loss_only_kernel(idx_ref, tgt_ref, table_ref, loss_ref):
    # Loss-only path: no logits writeback at all (dominant HBM traffic removed).
    v_pad = table_ref.shape[0]
    idx = idx_ref[0]
    tgt = tgt_ref[0]
    sub = jax.lax.broadcasted_iota(jnp.int32, (v_pad, 1), 0)
    onehot_t = (sub == idx).astype(jnp.float32)
    logits_t = jax.lax.dot_general(
        table_ref[...], onehot_t, (((0,), (0,)), ((), ())),
        preferred_element_type=jnp.float32)                       # (v_pad, tile_n)
    m = jnp.max(logits_t, axis=0, keepdims=True)
    lse = m + jnp.log(jnp.sum(jnp.exp(logits_t - m), axis=0, keepdims=True))
    picked = jnp.sum(jnp.where(sub == tgt, logits_t, 0.0), axis=0, keepdims=True)
    loss_ref[0, 0] = jnp.sum(jnp.where(tgt >= 0, lse - picked, 0.0))


# --------------------------------------------------------------------------
# Jitted entry points
# --------------------------------------------------------------------------

def _pack_tokens(x, n_pad, num_blocks, tile_n, pad_value):
    flat = x.reshape(-1).astype(jnp.int32)
    flat = jnp.pad(flat, (0, n_pad - flat.shape[0]), constant_values=pad_value)
    return flat.reshape(num_blocks, 1, tile_n)


@functools.partial(jax.jit, static_argnames=("v",))
def _forward_with_loss(idx, targets, table_p, *, v):
    B, T = idx.shape
    v_pad = table_p.shape[0]
    N = B * T
    n_pad, tile_n, _ = _padded_dims(N, v)
    num_blocks = n_pad // tile_n

    idx_p = _pack_tokens(idx, n_pad, num_blocks, tile_n, 0)       # pad id 0 (valid)
    tgt_p = _pack_tokens(targets, n_pad, num_blocks, tile_n, -1)  # -1 marks padding

    cost = pl.CostEstimate(
        flops=4 * n_pad * v_pad * v_pad,
        transcendentals=n_pad * v_pad,
        bytes_accessed=4 * (n_pad * v + v_pad * v_pad + 2 * n_pad + num_blocks),
    )

    logits_p, partial = pl.pallas_call(
        _logits_loss_kernel,
        out_shape=(
            jax.ShapeDtypeStruct((n_pad, v), jnp.float32),
            jax.ShapeDtypeStruct((num_blocks, 1), jnp.float32),
        ),
        grid=(num_blocks,),
        in_specs=[
            pl.BlockSpec((1, 1, tile_n), lambda i: (i, 0, 0)),
            pl.BlockSpec((1, 1, tile_n), lambda i: (i, 0, 0)),
            pl.BlockSpec((v_pad, v_pad), lambda i: (0, 0)),   # table stays resident
        ],
        out_specs=(
            pl.BlockSpec((tile_n, v), lambda i: (i, 0)),
            pl.BlockSpec((1, 1), lambda i: (i, 0),
                         memory_space=pltpu.MemorySpace.SMEM),
        ),
        compiler_params=pltpu.CompilerParams(
            dimension_semantics=("parallel",)),
        cost_estimate=cost,
    )(idx_p, tgt_p, table_p)

    logits = logits_p if n_pad == N else logits_p[:N]
    logits = logits.reshape(B, T, v)
    loss = jnp.sum(partial) / jnp.float32(N)
    return logits, loss


@functools.partial(jax.jit, static_argnames=("v",))
def _forward_logits(idx, table_p, *, v):
    B, T = idx.shape
    v_pad = table_p.shape[0]
    N = B * T
    n_pad, tile_n, _ = _padded_dims(N, v)
    num_blocks = n_pad // tile_n

    idx_p = _pack_tokens(idx, n_pad, num_blocks, tile_n, 0)

    cost = pl.CostEstimate(
        flops=2 * n_pad * v_pad * v_pad,
        transcendentals=0,
        bytes_accessed=4 * (n_pad * v + v_pad * v_pad + n_pad),
    )

    logits_p = pl.pallas_call(
        _logits_kernel,
        out_shape=jax.ShapeDtypeStruct((n_pad, v), jnp.float32),
        grid=(num_blocks,),
        in_specs=[
            pl.BlockSpec((1, 1, tile_n), lambda i: (i, 0, 0)),
            pl.BlockSpec((v_pad, v_pad), lambda i: (0, 0)),
        ],
        out_specs=pl.BlockSpec((tile_n, v), lambda i: (i, 0)),
        compiler_params=pltpu.CompilerParams(
            dimension_semantics=("parallel",)),
        cost_estimate=cost,
    )(idx_p, table_p)

    logits = logits_p if n_pad == N else logits_p[:N]
    return logits.reshape(B, T, v)


@functools.partial(jax.jit, static_argnames=("v",))
def _loss_only(idx, targets, table_p, *, v):
    B, T = idx.shape
    v_pad = table_p.shape[0]
    N = B * T
    n_pad, tile_n, _ = _padded_dims(N, v)
    num_blocks = n_pad // tile_n

    idx_p = _pack_tokens(idx, n_pad, num_blocks, tile_n, 0)
    tgt_p = _pack_tokens(targets, n_pad, num_blocks, tile_n, -1)

    cost = pl.CostEstimate(
        flops=2 * n_pad * v_pad * v_pad,
        transcendentals=n_pad * v_pad,
        bytes_accessed=4 * (v_pad * v_pad + 2 * n_pad + num_blocks),
    )

    partial = pl.pallas_call(
        _loss_only_kernel,
        out_shape=jax.ShapeDtypeStruct((num_blocks, 1), jnp.float32),
        grid=(num_blocks,),
        in_specs=[
            pl.BlockSpec((1, 1, tile_n), lambda i: (i, 0, 0)),
            pl.BlockSpec((1, 1, tile_n), lambda i: (i, 0, 0)),
            pl.BlockSpec((v_pad, v_pad), lambda i: (0, 0)),
        ],
        out_specs=pl.BlockSpec((1, 1), lambda i: (i, 0),
                               memory_space=pltpu.MemorySpace.SMEM),
        compiler_params=pltpu.CompilerParams(
            dimension_semantics=("parallel",)),
        cost_estimate=cost,
    )(idx_p, tgt_p, table_p)

    return jnp.sum(partial) / jnp.float32(N)


# --------------------------------------------------------------------------
# Module-like wrapper
# --------------------------------------------------------------------------

class BigramLanguageModel:
    """Mirrors the PyTorch BigramLanguageModel forward pass."""

    def __init__(self, vocab_size, key):
        self.vocab_size = vocab_size
        # nn.Embedding default init ~ N(0, 1)
        self.table = jax.random.normal(key, (vocab_size, vocab_size),
                                       dtype=jnp.float32)
        # Pad (and pre-bake the -inf lane mask) once at parameter init.
        self.table_padded = prepare_table(self.table)

    def __call__(self, idx, targets=None):
        if targets is None:
            return _forward_logits(idx, self.table_padded, v=self.vocab_size), None
        return _forward_with_loss(idx, targets, self.table_padded,
                                  v=self.vocab_size)

    def loss(self, idx, targets):
        """Loss-only fast path (no logits writeback) for training steps."""
        return _loss_only(idx, targets, self.table_padded, v=self.vocab_size)

    # TODO(synk): torch.multinomial-based generate() is host-side autoregressive
    # sampling, not a kernel hot path; it is not implemented in Pallas.


if __name__ == "__main__":
    B, T, V = 2, 8, 65  # batch, block_size, vocab_size
    key = jax.random.PRNGKey(0)
    k_tab, k_idx, k_tgt = jax.random.split(key, 3)

    model = BigramLanguageModel(V, k_tab)
    idx = jax.random.randint(k_idx, (B, T), 0, V, dtype=jnp.int32)
    targets = jax.random.randint(k_tgt, (B, T), 0, V, dtype=jnp.int32)

    # Training path (with targets).
    logits, loss = model(idx, targets)
    jax.block_until_ready((logits, loss))

    # Inference path (targets=None) -> loss-free kernel variant.
    logits_inf, loss_inf = model(idx, None)
    jax.block_until_ready(logits_inf)

    # Loss-only fast path (no logits writeback).
    loss_only = model.loss(idx, targets)
    jax.block_until_ready(loss_only)

    # Pure-JAX reference.
    ref_logits = model.table[idx]                             # (B, T, V)
    flat = ref_logits.reshape(B * T, V)
    tflat = targets.reshape(B * T)
    lse = jax.scipy.special.logsumexp(flat, axis=-1)
    ref_loss = jnp.mean(lse - flat[jnp.arange(B * T), tflat])

    assert logits.shape == (B, T, V)
    assert loss_inf is None
    assert jnp.allclose(logits, ref_logits, atol=1e-5, rtol=1e-5)
    assert jnp.allclose(logits_inf, ref_logits, atol=1e-5, rtol=1e-5)
    assert jnp.allclose(loss, ref_loss, atol=1e-5, rtol=1e-5)
    assert jnp.allclose(loss_only, ref_loss, atol=1e-5, rtol=1e-5)

    print("KERNEL_OK")
</pallas_src>

<mosaic_0001>
module attributes {stable_mosaic.version = 11 : i64} {
  func.func @_logits_loss_kernel(%arg0: i32, %arg1: memref<1x1x128xi32, #tpu.memory_space<vmem>>, %arg2: memref<1x1x128xi32, #tpu.memory_space<vmem>>, %arg3: memref<128x128xf32, #tpu.memory_space<vmem>>, %arg4: memref<128x65xf32, #tpu.memory_space<vmem>>, %arg5: memref<1x1xf32, #tpu.memory_space<smem>>) attributes {dimension_semantics = [#tpu.dimension_semantics<parallel>], iteration_bounds = array<i64: 1>, scalar_prefetch = 0 : i64, scratch_operands = 0 : i64, tpu.core_type = #tpu.core_type<tc>, window_params = [{transform_indices = @transform_0, window_bounds = array<i64: 1, 1, 128>}, {transform_indices = @transform_1, window_bounds = array<i64: 1, 1, 128>}, {pipeline_mode = #tpu.pipeline_mode<synchronous>, transform_indices = @transform_2, window_bounds = array<i64: 128, 128>}, {transform_indices = @transform_3, window_bounds = array<i64: 128, 65>}, {transform_indices = @transform_4, window_bounds = array<i64: 1, 1>}]} {
    %c0 = arith.constant 0 : index
    %c0_0 = arith.constant 0 : index
    %c0_1 = arith.constant 0 : index
    %0 = vector.load %arg1[%c0, %c0_0, %c0_1] : memref<1x1x128xi32, #tpu.memory_space<vmem>>, vector<1x1x128xi32>
    %1 = vector.shape_cast %0 : vector<1x1x128xi32> to vector<1x128xi32>
    %c0_2 = arith.constant 0 : index
    %c0_3 = arith.constant 0 : index
    %c0_4 = arith.constant 0 : index
    %2 = vector.load %arg2[%c0_2, %c0_3, %c0_4] : memref<1x1x128xi32, #tpu.memory_space<vmem>>, vector<1x1x128xi32>
    %3 = vector.shape_cast %2 : vector<1x1x128xi32> to vector<1x128xi32>
    %4 = tpu.iota {dimensions = array<i32: 0>} : vector<128x1xi32>
    %5 = vector.broadcast %4 : vector<128x1xi32> to vector<128x128xi32>
    %6 = vector.broadcast %1 : vector<1x128xi32> to vector<128x128xi32>
    %7 = arith.cmpi eq, %5, %6 : vector<128x128xi32>
    %8 = arith.extui %7 : vector<128x128xi1> to vector<128x128xi32>
    %9 = arith.sitofp %8 : vector<128x128xi32> to vector<128x128xf32>
    %c0_5 = arith.constant 0 : index
    %c0_6 = arith.constant 0 : index
    %10 = vector.load %arg3[%c0_5, %c0_6] : memref<128x128xf32, #tpu.memory_space<vmem>>, vector<128x128xf32>
    %cst = arith.constant dense<0.000000e+00> : vector<128x128xf32>
    %11 = tpu.matmul %9, %10, %cst {dimension_numbers = #tpu.dot_dimension_numbers<[0], [0], [1], [1], [0, 1, 1, 1], [], []>} : vector<128x128xf32>, vector<128x128xf32>, vector<128x128xf32> -> vector<128x128xf32>
    %12 = vector.extract_strided_slice %11 {offsets = [0, 0], sizes = [128, 65], strides = [1, 1]} : vector<128x128xf32> to vector<128x65xf32>
    %c0_7 = arith.constant 0 : index
    %c0_8 = arith.constant 0 : index
    %13 = vector.load %arg4[%c0_7, %c0_8] : memref<128x65xf32, #tpu.memory_space<vmem>>, vector<128x65xf32>
    tpu.vector_store %arg4[%c0_7, %c0_8], %12 {strides = array<i32>} : memref<128x65xf32, #tpu.memory_space<vmem>>, vector<128x65xf32>,
    %cst_9 = arith.constant dense<0.000000e+00> : vector<128x128xf32>
    %14 = tpu.matmul %10, %9, %cst_9 {dimension_numbers = #tpu.dot_dimension_numbers<[0], [0], [1], [1], [0, 1, 1, 1], [], []>} : vector<128x128xf32>, vector<128x128xf32>, vector<128x128xf32> -> vector<128x128xf32>
    %cst_10 = arith.constant dense<0xFF800000> : vector<128xf32>
    %15 = vector.multi_reduction <maximumf>, %14, %cst_10 [0] : vector<128x128xf32> to vector<128xf32>
    %16 = vector.shape_cast %15 : vector<128xf32> to vector<1x128xf32>
    %17 = vector.broadcast %16 : vector<1x128xf32> to vector<128x128xf32>
    %18 = arith.subf %14, %17 : vector<128x128xf32>
    %19 = math.exp %18 : vector<128x128xf32>
    %cst_11 = arith.constant dense<0.000000e+00> : vector<128xf32>
    %20 = vector.multi_reduction <add>, %19, %cst_11 [0] : vector<128x128xf32> to vector<128xf32>
    %21 = vector.shape_cast %20 : vector<128xf32> to vector<1x128xf32>
    %22 = math.log %21 : vector<1x128xf32>
    %23 = arith.addf %16, %22 : vector<1x128xf32>
    %24 = vector.broadcast %4 : vector<128x1xi32> to vector<128x128xi32>
    %25 = vector.broadcast %3 : vector<1x128xi32> to vector<128x128xi32>
    %26 = arith.cmpi eq, %24, %25 : vector<128x128xi32>
    %cst_12 = arith.constant 0.000000e+00 : f32
    %27 = vector.broadcast %cst_12 : f32 to vector<128x128xf32>
    %28 = arith.select %26, %14, %27 : vector<128x128xi1>, vector<128x128xf32>
    %cst_13 = arith.constant dense<0.000000e+00> : vector<128xf32>
    %29 = vector.multi_reduction <add>, %28, %cst_13 [0] : vector<128x128xf32> to vector<128xf32>
    %30 = vector.shape_cast %29 : vector<128xf32> to vector<1x128xf32>
    %c0_i32 = arith.constant 0 : i32
    %31 = vector.broadcast %c0_i32 : i32 to vector<1x128xi32>
    %32 = arith.cmpi sge, %3, %31 : vector<1x128xi32>
    %33 = arith.subf %23, %30 : vector<1x128xf32>
    %cst_14 = arith.constant 0.000000e+00 : f32
    %34 = vector.broadcast %cst_14 : f32 to vector<1x128xf32>
    %35 = arith.select %32, %33, %34 : vector<1x128xi1>, vector<1x128xf32>
    %36 = vector.shape_cast %35 : vector<1x128xf32> to vector<1x1x128xf32>
    %cst_15 = arith.constant dense<0.000000e+00> : vector<1xf32>
    %37 = vector.multi_reduction <add>, %36, %cst_15 [1, 2] : vector<1x1x128xf32> to vector<1xf32>
    %38 = vector.shape_cast %37 : vector<1xf32> to vector<1x1x1xf32>
    %39 = vector.extract %38[0, 0, 0] : f32 from vector<1x1x1xf32>
    %c0_16 = arith.constant 0 : index
    %c0_17 = arith.constant 0 : index
    %40 = memref.load %arg5[%c0_16, %c0_17] : memref<1x1xf32, #tpu.memory_space<smem>>
    memref.store %39, %arg5[%c0_16, %c0_17] : memref<1x1xf32, #tpu.memory_space<smem>>
    return
  }
  func.func @transform_0(%arg0: i32) -> (i32, i32, i32) {
    %c0_i32 = arith.constant 0 : i32
    %c0_i32_0 = arith.constant 0 : i32
    %c0_i32_1 = arith.constant 0 : i32
    return %arg0, %c0_i32, %c0_i32_0 : i32, i32, i32
  }
  func.func @transform_1(%arg0: i32) -> (i32, i32, i32) {
    %c0_i32 = arith.constant 0 : i32
    %c0_i32_0 = arith.constant 0 : i32
    %c0_i32_1 = arith.constant 0 : i32
    return %arg0, %c0_i32, %c0_i32_0 : i32, i32, i32
  }
  func.func @transform_2(%arg0: i32) -> (i32, i32) {
    %c0_i32 = arith.constant 0 : i32
    %c0_i32_0 = arith.constant 0 : i32
    %c0_i32_1 = arith.constant 0 : i32
    return %c0_i32, %c0_i32_0 : i32, i32
  }
  func.func @transform_3(%arg0: i32) -> (i32, i32) {
    %c0_i32 = arith.constant 0 : i32
    %c0_i32_0 = arith.constant 0 : i32
    return %arg0, %c0_i32 : i32, i32
  }
  func.func @transform_4(%arg0: i32) -> (i32, i32) {
    %c0_i32 = arith.constant 0 : i32
    %c0_i32_0 = arith.constant 0 : i32
    return %arg0, %c0_i32 : i32, i32
  }
}

</mosaic_0001>

<llo_original>
// kernel: _forward_with_loss.1
$region0: #{_forward_with_loss.1}
  #allocation0 [shape = 'u32[]', space=smem, size = 0x4, offset = 0x4, fixed_abs, tag = 'smem constant byte address 0x4 - core index']
  #allocation1 [shape = 'u32[144,128]{1,0:T(1,128)}', space=vmem, size = 0x12000, scoped, tag = 'internal scratch']
  %s0 = inlined_call_operand.vmem [shape: s32[1,1,128], index: 0, kind: input, shape index: {}]
  %s1 = inlined_call_operand.vmem [shape: s32[1,1,128], index: 1, kind: input, shape index: {}]
  %s2 = inlined_call_operand.hbm [shape: f32[128,128], index: 2, kind: input, shape index: {}]
  %s3 = inlined_call_operand.vmem [shape: f32[128,65], index: 3, kind: output, shape index: {0}]
  %s4 = inlined_call_operand.hbm [shape: f32[1,1], index: 4, kind: output, shape index: {1}]
  %5 = xla_tuple %s3, %s4
  %s6 = sld [smem:[#allocation0]]
  $region34: #{_forward_with_loss.1} parent=0
    _
  %s8 = ssub.s32 1, %s6
  %s9 = scalar_select 0, %s8, %s6
  $region1: #{_forward_with_loss.1} parent=0
    #allocation2 [shape = 'u8[65536]{0}', space=vmem, size = 0x10000, scoped, tag = 'input window, operand 2, single buffered']
    #allocation3 [shape = 's32[1]{0}', space=sflag, size = 0x4, scoped, tag = 'scoped memory for _forward_with_loss.1']
    #allocation4 [shape = 's32[1]{0}', space=sflag, size = 0x4, scoped, tag = 'scoped memory for _forward_with_loss.1']
    #allocation5 [shape = 'u8[512]{0}', space=smem, size = 0x200, scoped, tag = 'output window, operand 1, single buffered']
    %10 = vsyncpa [#allocation3], 0
    %11 = vsyncpa [#allocation4], 0
    // Predicated region
    $region2: #{_forward_with_loss.1} parent=1 // pred_check
      _
    $region3: #{_forward_with_loss.1} parent=1 // pred_check_branch
      %13 = sbr.rel (0) target = $region5
    $region4: #{_forward_with_loss.1} parent=1 // pred_region
      _
    $region5: #{_forward_with_loss.1} parent=1 // pred_fallthru
      _
    // Predicated region
    $region6: #{_forward_with_loss.1} parent=1 // pred_check
      _
    $region7: #{_forward_with_loss.1} parent=1 // pred_check_branch
      %15 = sbr.rel (0) target = $region9
    $region8: #{_forward_with_loss.1} parent=1 // pred_region
      _
    $region9: #{_forward_with_loss.1} parent=1 // pred_fallthru
      _
    // Predicated region
    $region10: #{_forward_with_loss.1} parent=1 // pred_check
      _
    $region11: #{_forward_with_loss.1} parent=1 // pred_check_branch
      %17 = sbr.rel (0) target = $region13
    $region12: #{_forward_with_loss.1} parent=1 // pred_region
      %s19 = ssub.s32 2048, 2048
      %20 = vsyncadd [#allocation3], %s19
      %s21 = sshll.u32 [#allocation2], 4
      %s22 = int_to_ptr.vmem [resolvable:$true] %s21
      %27 = dma.hbm_to_vmem [thread:$0]  %s2, 2048, %s22, [#allocation3], 128, 128, 8
    $region13: #{_forward_with_loss.1} parent=1 // pred_fallthru
      _
    // Predicated region
    $region14: #{_forward_with_loss.1} parent=1 // pred_check
      _
    $region15: #{_forward_with_loss.1} parent=1 // pred_check_branch
      %29 = sbr.rel (0) target = $region17
    $region16: #{_forward_with_loss.1} parent=1 // pred_region
      %30 = dma.done [#allocation3], 2048
    $region17: #{_forward_with_loss.1} parent=1 // pred_fallthru
      _
    %v31 = vld [vmem:[%s0] sm:$0x1]
    %v32 = vld [vmem:[%s1] sm:$0x1]
    %v33 = vlaneseq
    %v34 = vshrl.u32 %v33, 7
    %v35 = vadd.s32 %v34, 8
    %v36 = vadd.s32 %v34, 16
    %v37 = vadd.s32 %v34, 24
    %v38 = vadd.s32 %v34, 32
    %v39 = vadd.s32 %v34, 40
    %v40 = vadd.s32 %v34, 48
    %v41 = vadd.s32 %v34, 56
    %v42 = vadd.s32 %v34, 64
    %v43 = vadd.s32 %v34, 72
    %v44 = vadd.s32 %v34, 80
    %v45 = vadd.s32 %v34, 88
    %v46 = vadd.s32 %v34, 96
    %v47 = vadd.s32 %v34, 104
    %v48 = vadd.s32 %v34, 112
    %v49 = vadd.s32 %v34, 120
    %v50 = vlaneseq
    %v51 = vshrl.u32 %v50, 7
    %v52 = vsub.s32 0, %v51
    %v53 = vrot.slane %v31, %v52
    %vm54 = vcmp.eq.s32.totalorder %v34, %v53
    %vm55 = vcmp.eq.s32.totalorder %v35, %v53
    %vm56 = vcmp.eq.s32.totalorder %v36, %v53
    %vm57 = vcmp.eq.s32.totalorder %v37, %v53
    %vm58 = vcmp.eq.s32.totalorder %v38, %v53
    %vm59 = vcmp.eq.s32.totalorder %v39, %v53
    %vm60 = vcmp.eq.s32.totalorder %v40, %v53
    %vm61 = vcmp.eq.s32.totalorder %v41, %v53
    %vm62 = vcmp.eq.s32.totalorder %v42, %v53
    %vm63 = vcmp.eq.s32.totalorder %v43, %v53
    %vm64 = vcmp.eq.s32.totalorder %v44, %v53
    %vm65 = vcmp.eq.s32.totalorder %v45, %v53
    %vm66 = vcmp.eq.s32.totalorder %v46, %v53
    %vm67 = vcmp.eq.s32.totalorder %v47, %v53
    %vm68 = vcmp.eq.s32.totalorder %v48, %v53
    %vm69 = vcmp.eq.s32.totalorder %v49, %v53
    %v70 = vsel %vm54, 1, 0
    %v71 = vsel %vm55, 1, 0
    %v72 = vsel %vm56, 1, 0
    %v73 = vsel %vm57, 1, 0
    %v74 = vsel %vm58, 1, 0
    %v75 = vsel %vm59, 1, 0
    %v76 = vsel %vm60, 1, 0
    %v77 = vsel %vm61, 1, 0
    %v78 = vsel %vm62, 1, 0
    %v79 = vsel %vm63, 1, 0
    %v80 = vsel %vm64, 1, 0
    %v81 = vsel %vm65, 1, 0
    %v82 = vsel %vm66, 1, 0
    %v83 = vsel %vm67, 1, 0
    %v84 = vsel %vm68, 1, 0
    %v85 = vsel %vm69, 1, 0
    %v86 = vcvt.s32.f32 %v70
    %v87 = vcvt.s32.f32 %v71
    %v88 = vcvt.s32.f32 %v72
    %v89 = vcvt.s32.f32 %v73
    %v90 = vcvt.s32.f32 %v74
    %v91 = vcvt.s32.f32 %v75
    %v92 = vcvt.s32.f32 %v76
    %v93 = vcvt.s32.f32 %v77
    %v94 = vcvt.s32.f32 %v78
    %v95 = vcvt.s32.f32 %v79
    %v96 = vcvt.s32.f32 %v80
    %v97 = vcvt.s32.f32 %v81
    %v98 = vcvt.s32.f32 %v82
    %v99 = vcvt.s32.f32 %v83
    %v100 = vcvt.s32.f32 %v84
    %v101 = vcvt.s32.f32 %v85
    %v102 = vld [vmem:[#allocation2] sm:$0xff]
    %v103 = vld [vmem:[#allocation2 + $0x8] sm:$0xff]
    %v104 = vld [vmem:[#allocation2 + $0x10] sm:$0xff]
    %v105 = vld [vmem:[#allocation2 + $0x18] sm:$0xff]
    %v106 = vld [vmem:[#allocation2 + $0x20] sm:$0xff]
    %v107 = vld [vmem:[#allocation2 + $0x28] sm:$0xff]
    %v108 = vld [vmem:[#allocation2 + $0x30] sm:$0xff]
    %v109 = vld [vmem:[#allocation2 + $0x38] sm:$0xff]
    %v110 = vld [vmem:[#allocation2 + $0x40] sm:$0xff]
    %v111 = vld [vmem:[#allocation2 + $0x48] sm:$0xff]
    %v112 = vld [vmem:[#allocation2 + $0x50] sm:$0xff]
    %v113 = vld [vmem:[#allocation2 + $0x58] sm:$0xff]
    %v114 = vld [vmem:[#allocation2 + $0x60] sm:$0xff]
    %v115 = vld [vmem:[#allocation2 + $0x68] sm:$0xff]
    %v116 = vld [vmem:[#allocation2 + $0x70] sm:$0xff]
    %v117 = vld [vmem:[#allocation2 + $0x78] sm:$0xff]
    %118 = vxpose.xlu0.b32.start [1/16] %v86, 128
    %119 = vxpose.xlu0.b32.cont [2/16] %v87, 128
    %120 = vxpose.xlu0.b32.cont [3/16] %v88, 128
    %121 = vxpose.xlu0.b32.cont [4/16] %v89, 128
    %122 = vxpose.xlu0.b32.cont [5/16] %v90, 128
    %123 = vxpose.xlu0.b32.cont [6/16] %v91, 128
    %124 = vxpose.xlu0.b32.cont [7/16] %v92, 128
    %125 = vxpose.xlu0.b32.cont [8/16] %v93, 128
    %126 = vxpose.xlu0.b32.cont [9/16] %v94, 128
    %127 = vxpose.xlu0.b32.cont [10/16] %v95, 128
    %128 = vxpose.xlu0.b32.cont [11/16] %v96, 128
    %129 = vxpose.xlu0.b32.cont [12/16] %v97, 128
    %130 = vxpose.xlu0.b32.cont [13/16] %v98, 128
    %131 = vxpose.xlu0.b32.cont [14/16] %v99, 128
    %132 = vxpose.xlu0.b32.cont [15/16] %v100, 128
    %133 = vxpose.xlu0.b32.end [16/16] %v101, 128
    %v134 = vpop.trf.xlu0
    %v135 = vpop.trf.xlu0
    %v136 = vpop.trf.xlu0
    %v137 = vpop.trf.xlu0
    %v138 = vpop.trf.xlu0
    %v139 = vpop.trf.xlu0
    %v140 = vpop.trf.xlu0
    %v141 = vpop.trf.xlu0
    %v142 = vpop.trf.xlu0
    %v143 = vpop.trf.xlu0
    %v144 = vpop.trf.xlu0
    %v145 = vpop.trf.xlu0
    %v146 = vpop.trf.xlu0
    %v147 = vpop.trf.xlu0
    %v148 = vpop.trf.xlu0
    %v149 = vpop.trf.xlu0
    %150 = vmatprep.subr.mxu0 0.0
    %151 = vmatpush1.msra.mxu0 %v102
    %152 = vmatprep.subr.mxu0 0.0
    %153 = vmatpush1.msra.mxu0 %v103
    %154 = vmatprep.subr.mxu0 0.0
    %155 = vmatpush1.msra.mxu0 %v104
    %156 = vmatprep.subr.mxu0 0.0
    %157 = vmatpush1.msra.mxu0 %v105
    %158 = vmatprep.subr.mxu0 0.0
    %159 = vmatpush1.msra.mxu0 %v106
    %160 = vmatprep.subr.mxu0 0.0
    %161 = vmatpush1.msra.mxu0 %v107
    %162 = vmatprep.subr.mxu0 0.0
    %163 = vmatpush1.msra.mxu0 %v108
    %164 = vmatprep.subr.mxu0 0.0
    %165 = vmatpush1.msra.mxu0 %v109
    %166 = vmatprep.subr.mxu0 0.0
    %167 = vmatpush1.msra.mxu0 %v110
    %168 = vmatprep.subr.mxu0 0.0
    %169 = vmatpush1.msra.mxu0 %v111
    %170 = vmatprep.subr.mxu0 0.0
    %171 = vmatpush1.msra.mxu0 %v112
    %172 = vmatprep.subr.mxu0 0.0
    %173 = vmatpush1.msra.mxu0 %v113
    %174 = vmatprep.subr.mxu0 0.0
    %175 = vmatpush1.msra.mxu0 %v114
    %176 = vmatprep.subr.mxu0 0.0
    %177 = vmatpush1.msra.mxu0 %v115
    %178 = vmatprep.subr.mxu0 0.0
    %179 = vmatpush1.msra.mxu0 %v116
    %180 = vmatprep.subr.mxu0 0.0
    %181 = vmatpush1.msra.mxu0 %v117
    %182 = vmatprep.subr.mxu0 0.0
    %183 = vmatpush1.msra.mxu0 0.0
    %184 = vmatprep.subr.mxu0 0.0
    %185 = vmatpush1.msra.mxu0 0.0
    %186 = vmatprep.subr.mxu0 0.0
    %187 = vmatpush1.msra.mxu0 0.0
    %188 = vmatprep.subr.mxu0 0.0
    %189 = vmatpush1.msra.mxu0 0.0
    %190 = vmatprep.subr.mxu0 0.0
    %191 = vmatpush1.msra.mxu0 0.0
    %192 = vmatprep.subr.mxu0 0.0
    %193 = vmatpush1.msra.mxu0 0.0
    %194 = vmatprep.subr.mxu0 0.0
    %195 = vmatpush1.msra.mxu0 0.0
    %196 = vmatprep.subr.mxu0 0.0
    %197 = vmatpush1.msra.mxu0 0.0
    %198 = vmatprep.subr.mxu0 0.0
    %199 = vmatpush1.msra.mxu0 0.0
    %200 = vmatprep.subr.mxu0 0.0
    %201 = vmatpush1.msra.mxu0 0.0
    %202 = vmatprep.subr.mxu0 0.0
    %203 = vmatpush1.msra.mxu0 0.0
    %204 = vmatprep.subr.mxu0 0.0
    %205 = vmatpush1.msra.mxu0 0.0
    %206 = vmatprep.subr.mxu0 0.0
    %207 = vmatpush1.msra.mxu0 0.0
    %208 = vmatprep.subr.mxu0 0.0
    %209 = vmatpush1.msra.mxu0 0.0
    %210 = vmatprep.subr.mxu0 0.0
    %211 = vmatpush1.msra.mxu0 0.0
    %212 = vmatprep.subr.mxu0 0.0
    %213 = vmatpush1.msra.mxu0 0.0
    %214 = vmatprep.mubr.f32.mxu0 0.0
    %215 = vmatmul.mubr.f32.gmra.mrb[0].mxu0 %v134
    %v216 = vpop.f32.mrb[0].mxu0
    %v217 = vadd.f32 0.0, %v216
    %v218 = vpop.f32.mrb[0].mxu0
    %219 = vmatprep.mubr.f32.mxu0 0.0
    %220 = vmatmul.mubr.f32.gmra.mrb[0].mxu0 %v135
    %v221 = vpop.f32.mrb[0].mxu0
    %v222 = vadd.f32 0.0, %v221
    %v223 = vpop.f32.mrb[0].mxu0
    %224 = vmatprep.mubr.f32.mxu0 0.0
    %225 = vmatmul.mubr.f32.gmra.mrb[0].mxu0 %v136
    %v226 = vpop.f32.mrb[0].mxu0
    %v227 = vadd.f32 0.0, %v226
    %v228 = vpop.f32.mrb[0].mxu0
    %229 = vmatprep.mubr.f32.mxu0 0.0
    %230 = vmatmul.mubr.f32.gmra.mrb[0].mxu0 %v137
    %v231 = vpop.f32.mrb[0].mxu0
    %v232 = vadd.f32 0.0, %v231
    %v233 = vpop.f32.mrb[0].mxu0
    %234 = vmatprep.mubr.f32.mxu0 0.0
    %235 = vmatmul.mubr.f32.gmra.mrb[0].mxu0 %v138
    %v236 = vpop.f32.mrb[0].mxu0
    %v237 = vadd.f32 0.0, %v236
    %v238 = vpop.f32.mrb[0].mxu0
    %239 = vmatprep.mubr.f32.mxu0 0.0
    %240 = vmatmul.mubr.f32.gmra.mrb[0].mxu0 %v139
    %v241 = vpop.f32.mrb[0].mxu0
    %v242 = vadd.f32 0.0, %v241
    %v243 = vpop.f32.mrb[0].mxu0
    %244 = vmatprep.mubr.f32.mxu0 0.0
    %245 = vmatmul.mubr.f32.gmra.mrb[0].mxu0 %v140
    %v246 = vpop.f32.mrb[0].mxu0
    %v247 = vadd.f32 0.0, %v246
    %v248 = vpop.f32.mrb[0].mxu0
    %249 = vmatprep.mubr.f32.mxu0 0.0
    %250 = vmatmul.mubr.f32.gmra.mrb[0].mxu0 %v141
    %v251 = vpop.f32.mrb[0].mxu0
    %v252 = vadd.f32 0.0, %v251
    %v253 = vpop.f32.mrb[0].mxu0
    %254 = vmatprep.mubr.f32.mxu0 0.0
    %255 = vmatmul.mubr.f32.gmra.mrb[0].mxu0 %v142
    %v256 = vpop.f32.mrb[0].mxu0
    %v257 = vadd.f32 0.0, %v256
    %v258 = vpop.f32.mrb[0].mxu0
    %259 = vmatprep.mubr.f32.mxu0 0.0
    %260 = vmatmul.mubr.f32.gmra.mrb[0].mxu0 %v143
    %v261 = vpop.f32.mrb[0].mxu0
    %v262 = vadd.f32 0.0, %v261
    %v263 = vpop.f32.mrb[0].mxu0
    %264 = vmatprep.mubr.f32.mxu0 0.0
    %265 = vmatmul.mubr.f32.gmra.mrb[0].mxu0 %v144
    %v266 = vpop.f32.mrb[0].mxu0
    %v267 = vadd.f32 0.0, %v266
    %v268 = vpop.f32.mrb[0].mxu0
    %269 = vmatprep.mubr.f32.mxu0 0.0
    %270 = vmatmul.mubr.f32.gmra.mrb[0].mxu0 %v145
    %v271 = vpop.f32.mrb[0].mxu0
    %v272 = vadd.f32 0.0, %v271
    %v273 = vpop.f32.mrb[0].mxu0
    %274 = vmatprep.mubr.f32.mxu0 0.0
    %275 = vmatmul.mubr.f32.gmra.mrb[0].mxu0 %v146
    %v276 = vpop.f32.mrb[0].mxu0
    %v277 = vadd.f32 0.0, %v276
    %v278 = vpop.f32.mrb[0].mxu0
    %279 = vmatprep.mubr.f32.mxu0 0.0
    %280 = vmatmul.mubr.f32.gmra.mrb[0].mxu0 %v147
    %v281 = vpop.f32.mrb[0].mxu0
    %v282 = vadd.f32 0.0, %v281
    %v283 = vpop.f32.mrb[0].mxu0
    %284 = vmatprep.mubr.f32.mxu0 0.0
    %285 = vmatmul.mubr.f32.gmra.mrb[0].mxu0 %v148
    %v286 = vpop.f32.mrb[0].mxu0
    %v287 = vadd.f32 0.0, %v286
    %v288 = vpop.f32.mrb[0].mxu0
    %289 = vmatprep.mubr.f32.mxu0 0.0
    %290 = vmatmul.mubr.f32.gmra.mrb[0].mxu0 %v149
    %v291 = vpop.f32.mrb[0].mxu0
    %v292 = vadd.f32 0.0, %v291
    %v293 = vpop.f32.mrb[0].mxu0
    %294 = vdwg.mxu0
    %vm295 = vcmask 531456
    %296 = vst.msk [vmem:[%s3] sm:$0xff] %vm295, %v217
    %297 = vst.msk [vmem:[%s3 + $0x8] sm:$0xff] %vm295, %v222
    %298 = vst.msk [vmem:[%s3 + $0x10] sm:$0xff] %vm295, %v227
    %299 = vst.msk [vmem:[%s3 + $0x18] sm:$0xff] %vm295, %v232
    %300 = vst.msk [vmem:[%s3 + $0x20] sm:$0xff] %vm295, %v237
    %301 = vst.msk [vmem:[%s3 + $0x28] sm:$0xff] %vm295, %v242
    %302 = vst.msk [vmem:[%s3 + $0x30] sm:$0xff] %vm295, %v247
    %303 = vst.msk [vmem:[%s3 + $0x38] sm:$0xff] %vm295, %v252
    %304 = vst.msk [vmem:[%s3 + $0x40] sm:$0xff] %vm295, %v257
    %305 = vst.msk [vmem:[%s3 + $0x48] sm:$0xff] %vm295, %v262
    %306 = vst.msk [vmem:[%s3 + $0x50] sm:$0xff] %vm295, %v267
    %307 = vst.msk [vmem:[%s3 + $0x58] sm:$0xff] %vm295, %v272
    %308 = vst.msk [vmem:[%s3 + $0x60] sm:$0xff] %vm295, %v277
    %309 = vst.msk [vmem:[%s3 + $0x68] sm:$0xff] %vm295, %v282
    %310 = vst.msk [vmem:[%s3 + $0x70] sm:$0xff] %vm295, %v287
    %311 = vst.msk [vmem:[%s3 + $0x78] sm:$0xff] %vm295, %v292
    %312 = vxpose.xlu0.b32.start [1/16] %v102, 128
    %313 = vxpose.xlu0.b32.cont [2/16] %v103, 128
    %314 = vxpose.xlu0.b32.cont [3/16] %v104, 128
    %315 = vxpose.xlu0.b32.cont [4/16] %v105, 128
    %316 = vxpose.xlu0.b32.cont [5/16] %v106, 128
    %317 = vxpose.xlu0.b32.cont [6/16] %v107, 128
    %318 = vxpose.xlu0.b32.cont [7/16] %v108, 128
    %319 = vxpose.xlu0.b32.cont [8/16] %v109, 128
    %320 = vxpose.xlu0.b32.cont [9/16] %v110, 128
    %321 = vxpose.xlu0.b32.cont [10/16] %v111, 128
    %322 = vxpose.xlu0.b32.cont [11/16] %v112, 128
    %323 = vxpose.xlu0.b32.cont [12/16] %v113, 128
    %324 = vxpose.xlu0.b32.cont [13/16] %v114, 128
    %325 = vxpose.xlu0.b32.cont [14/16] %v115, 128
    %326 = vxpose.xlu0.b32.cont [15/16] %v116, 128
    %327 = vxpose.xlu0.b32.end [16/16] %v117, 128
    %v328 = vpop.trf.xlu0
    %v329 = vpop.trf.xlu0
    %v330 = vpop.trf.xlu0
    %v331 = vpop.trf.xlu0
    %v332 = vpop.trf.xlu0
    %v333 = vpop.trf.xlu0
    %v334 = vpop.trf.xlu0
    %v335 = vpop.trf.xlu0
    %v336 = vpop.trf.xlu0
    %v337 = vpop.trf.xlu0
    %v338 = vpop.trf.xlu0
    %v339 = vpop.trf.xlu0
    %v340 = vpop.trf.xlu0
    %v341 = vpop.trf.xlu0
    %v342 = vpop.trf.xlu0
    %v343 = vpop.trf.xlu0
    %344 = vmatprep.subr.mxu0 0.0
    %345 = vmatpush1.msra.mxu0 %v86
    %346 = vmatprep.subr.mxu0 0.0
    %347 = vmatpush1.msra.mxu0 %v87
    %348 = vmatprep.subr.mxu0 0.0
    %349 = vmatpush1.msra.mxu0 %v88
    %350 = vmatprep.subr.mxu0 0.0
    %351 = vmatpush1.msra.mxu0 %v89
    %352 = vmatprep.subr.mxu0 0.0
    %353 = vmatpush1.msra.mxu0 %v90
    %354 = vmatprep.subr.mxu0 0.0
    %355 = vmatpush1.msra.mxu0 %v91
    %356 = vmatprep.subr.mxu0 0.0
    %357 = vmatpush1.msra.mxu0 %v92
    %358 = vmatprep.subr.mxu0 0.0
    %359 = vmatpush1.msra.mxu0 %v93
    %360 = vmatprep.subr.mxu0 0.0
    %361 = vmatpush1.msra.mxu0 %v94
    %362 = vmatprep.subr.mxu0 0.0
    %363 = vmatpush1.msra.mxu0 %v95
    %364 = vmatprep.subr.mxu0 0.0
    %365 = vmatpush1.msra.mxu0 %v96
    %366 = vmatprep.subr.mxu0 0.0
    %367 = vmatpush1.msra.mxu0 %v97
    %368 = vmatprep.subr.mxu0 0.0
    %369 = vmatpush1.msra.mxu0 %v98
    %370 = vmatprep.subr.mxu0 0.0
    %371 = vmatpush1.msra.mxu0 %v99
    %372 = vmatprep.subr.mxu0 0.0
    %373 = vmatpush1.msra.mxu0 %v100
    %374 = vmatprep.subr.mxu0 0.0
    %375 = vmatpush1.msra.mxu0 %v101
    %376 = vmatprep.subr.mxu0 0.0
    %377 = vmatpush1.msra.mxu0 0.0
    %378 = vmatprep.subr.mxu0 0.0
    %379 = vmatpush1.msra.mxu0 0.0
    %380 = vmatprep.subr.mxu0 0.0
    %381 = vmatpush1.msra.mxu0 0.0
    %382 = vmatprep.subr.mxu0 0.0
    %383 = vmatpush1.msra.mxu0 0.0
    %384 = vmatprep.subr.mxu0 0.0
    %385 = vmatpush1.msra.mxu0 0.0
    %386 = vmatprep.subr.mxu0 0.0
    %387 = vmatpush1.msra.mxu0 0.0
    %388 = vmatprep.subr.mxu0 0.0
    %389 = vmatpush1.msra.mxu0 0.0
    %390 = vmatprep.subr.mxu0 0.0
    %391 = vmatpush1.msra.mxu0 0.0
    %392 = vmatprep.subr.mxu0 0.0
    %393 = vmatpush1.msra.mxu0 0.0
    %394 = vmatprep.subr.mxu0 0.0
    %395 = vmatpush1.msra.mxu0 0.0
    %396 = vmatprep.subr.mxu0 0.0
    %397 = vmatpush1.msra.mxu0 0.0
    %398 = vmatprep.subr.mxu0 0.0
    %399 = vmatpush1.msra.mxu0 0.0
    %400 = vmatprep.subr.mxu0 0.0
    %401 = vmatpush1.msra.mxu0 0.0
    %402 = vmatprep.subr.mxu0 0.0
    %403 = vmatpush1.msra.mxu0 0.0
    %404 = vmatprep.subr.mxu0 0.0
    %405 = vmatpush1.msra.mxu0 0.0
    %406 = vmatprep.subr.mxu0 0.0
    %407 = vmatpush1.msra.mxu0 0.0
    %408 = vmatprep.mubr.f32.mxu0 0.0
    %409 = vmatmul.mubr.f32.gmra.mrb[0].mxu0 %v328
    %v410 = vpop.f32.mrb[0].mxu0
    %v411 = vadd.f32 0.0, %v410
    %v412 = vpop.f32.mrb[0].mxu0
    %413 = vmatprep.mubr.f32.mxu0 0.0
    %414 = vmatmul.mubr.f32.gmra.mrb[0].mxu0 %v329
    %v415 = vpop.f32.mrb[0].mxu0
    %v416 = vadd.f32 0.0, %v415
    %v417 = vpop.f32.mrb[0].mxu0
    %418 = vmatprep.mubr.f32.mxu0 0.0
    %419 = vmatmul.mubr.f32.gmra.mrb[0].mxu0 %v330
    %v420 = vpop.f32.mrb[0].mxu0
    %v421 = vadd.f32 0.0, %v420
    %v422 = vpop.f32.mrb[0].mxu0
    %423 = vmatprep.mubr.f32.mxu0 0.0
    %424 = vmatmul.mubr.f32.gmra.mrb[0].mxu0 %v331
    %v425 = vpop.f32.mrb[0].mxu0
    %v426 = vadd.f32 0.0, %v425
    %v427 = vpop.f32.mrb[0].mxu0
    %428 = vmatprep.mubr.f32.mxu0 0.0
    %429 = vmatmul.mubr.f32.gmra.mrb[0].mxu0 %v332
    %v430 = vpop.f32.mrb[0].mxu0
    %v431 = vadd.f32 0.0, %v430
    %v432 = vpop.f32.mrb[0].mxu0
    %433 = vmatprep.mubr.f32.mxu0 0.0
    %434 = vmatmul.mubr.f32.gmra.mrb[0].mxu0 %v333
    %v435 = vpop.f32.mrb[0].mxu0
    %v436 = vadd.f32 0.0, %v435
    %v437 = vpop.f32.mrb[0].mxu0
    %438 = vmatprep.mubr.f32.mxu0 0.0
    %439 = vmatmul.mubr.f32.gmra.mrb[0].mxu0 %v334
    %v440 = vpop.f32.mrb[0].mxu0
    %v441 = vadd.f32 0.0, %v440
    %v442 = vpop.f32.mrb[0].mxu0
    %443 = vmatprep.mubr.f32.mxu0 0.0
    %444 = vmatmul.mubr.f32.gmra.mrb[0].mxu0 %v335
    %v445 = vpop.f32.mrb[0].mxu0
    %v446 = vadd.f32 0.0, %v445
    %v447 = vpop.f32.mrb[0].mxu0
    %448 = vmatprep.mubr.f32.mxu0 0.0
    %449 = vmatmul.mubr.f32.gmra.mrb[0].mxu0 %v336
    %v450 = vpop.f32.mrb[0].mxu0
    %v451 = vadd.f32 0.0, %v450
    %v452 = vpop.f32.mrb[0].mxu0
    %453 = vmatprep.mubr.f32.mxu0 0.0
    %454 = vmatmul.mubr.f32.gmra.mrb[0].mxu0 %v337
    %v455 = vpop.f32.mrb[0].mxu0
    %v456 = vadd.f32 0.0, %v455
    %v457 = vpop.f32.mrb[0].mxu0
    %458 = vmatprep.mubr.f32.mxu0 0.0
    %459 = vmatmul.mubr.f32.gmra.mrb[0].mxu0 %v338
    %v460 = vpop.f32.mrb[0].mxu0
    %v461 = vadd.f32 0.0, %v460
    %v462 = vpop.f32.mrb[0].mxu0
    %463 = vmatprep.mubr.f32.mxu0 0.0
    %464 = vmatmul.mubr.f32.gmra.mrb[0].mxu0 %v339
    %v465 = vpop.f32.mrb[0].mxu0
    %v466 = vadd.f32 0.0, %v465
    %v467 = vpop.f32.mrb[0].mxu0
    %468 = vmatprep.mubr.f32.mxu0 0.0
    %469 = vmatmul.mubr.f32.gmra.mrb[0].mxu0 %v340
    %v470 = vpop.f32.mrb[0].mxu0
    %v471 = vadd.f32 0.0, %v470
    %v472 = vpop.f32.mrb[0].mxu0
    %473 = vmatprep.mubr.f32.mxu0 0.0
    %474 = vmatmul.mubr.f32.gmra.mrb[0].mxu0 %v341
    %v475 = vpop.f32.mrb[0].mxu0
    %v476 = vadd.f32 0.0, %v475
    %v477 = vpop.f32.mrb[0].mxu0
    %478 = vmatprep.mubr.f32.mxu0 0.0
    %479 = vmatmul.mubr.f32.gmra.mrb[0].mxu0 %v342
    %v480 = vpop.f32.mrb[0].mxu0
    %v481 = vadd.f32 0.0, %v480
    %v482 = vpop.f32.mrb[0].mxu0
    %483 = vmatprep.mubr.f32.mxu0 0.0
    %484 = vmatmul.mubr.f32.gmra.mrb[0].mxu0 %v343
    %v485 = vpop.f32.mrb[0].mxu0
    %v486 = vadd.f32 0.0, %v485
    %v487 = vpop.f32.mrb[0].mxu0
    %488 = vdwg.mxu0
    %v489 = vmax.f32 %v411, %v431
    %v490 = vmax.f32 %v416, %v436
    %v491 = vmax.f32 %v421, %v441
    %v492 = vmax.f32 %v426, %v446
    %v493 = vmax.f32 %v489, %v451
    %v494 = vmax.f32 %v490, %v456
    %v495 = vmax.f32 %v491, %v461
    %v496 = vmax.f32 %v492, %v466
    %v497 = vmax.f32 %v493, %v471
    %v498 = vmax.f32 %v494, %v476
    %v499 = vmax.f32 %v495, %v481
    %v500 = vmax.f32 %v496, %v486
    %v501 = vmax.f32 %v497, %v498
    %v502 = vmax.f32 %v499, %v500
    %v503 = vmax.f32 %v501, %v502
    %v504 = vrot.slane %v503, 4
    %v505 = vmax.f32 %v503, %v504
    %v506 = vrot.slane %v505, 2
    %v507 = vmax.f32 %v505, %v506
    %v508 = vrot.slane %v507, 1
    %v509 = vmax.f32 %v507, %v508
    %v510 = vsub.f32 %v411, %v509
    %v511 = vsub.f32 %v416, %v509
    %v512 = vsub.f32 %v421, %v509
    %v513 = vsub.f32 %v426, %v509
    %v514 = vsub.f32 %v431, %v509
    %v515 = vsub.f32 %v436, %v509
    %v516 = vsub.f32 %v441, %v509
    %v517 = vsub.f32 %v446, %v509
    %v518 = vsub.f32 %v451, %v509
    %v519 = vsub.f32 %v456, %v509
    %v520 = vsub.f32 %v461, %v509
    %v521 = vsub.f32 %v466, %v509
    %v522 = vsub.f32 %v471, %v509
    %v523 = vsub.f32 %v476, %v509
    %v524 = vsub.f32 %v481, %v509
    %v525 = vsub.f32 %v486, %v509
    %v526 = vmul.f32 %v510, 1.442695
    %v527 = vpow.pop %v526
    %v528 = vmul.f32 %v511, 1.442695
    %v529 = vpow.pop %v528
    %v530 = vmul.f32 %v512, 1.442695
    %v531 = vpow.pop %v530
    %v532 = vmul.f32 %v513, 1.442695
    %v533 = vpow.pop %v532
    %v534 = vmul.f32 %v514, 1.442695
    %v535 = vpow.pop %v534
    %v536 = vmul.f32 %v515, 1.442695
    %v537 = vpow.pop %v536
    %v538 = vmul.f32 %v516, 1.442695
    %v539 = vpow.pop %v538
    %v540 = vmul.f32 %v517, 1.442695
    %v541 = vpow.pop %v540
    %v542 = vmul.f32 %v518, 1.442695
    %v543 = vpow.pop %v542
    %v544 = vmul.f32 %v519, 1.442695
    %v545 = vpow.pop %v544
    %v546 = vmul.f32 %v520, 1.442695
    %v547 = vpow.pop %v546
    %v548 = vmul.f32 %v521, 1.442695
    %v549 = vpow.pop %v548
    %v550 = vmul.f32 %v522, 1.442695
    %v551 = vpow.pop %v550
    %v552 = vmul.f32 %v523, 1.442695
    %v553 = vpow.pop %v552
    %v554 = vmul.f32 %v524, 1.442695
    %v555 = vpow.pop %v554
    %v556 = vmul.f32 %v525, 1.442695
    %v557 = vpow.pop %v556
    %v558 = vadd.f32 %v527, %v529
    %v559 = vadd.f32 %v558, %v531
    %v560 = vadd.f32 %v559, %v533
    %v561 = vadd.f32 %v560, %v535
    %v562 = vadd.f32 %v561, %v537
    %v563 = vadd.f32 %v562, %v539
    %v564 = vadd.f32 %v563, %v541
    %v565 = vadd.f32 %v564, %v543
    %v566 = vadd.f32 %v565, %v545
    %v567 = vadd.f32 %v566, %v547
    %v568 = vadd.f32 %v567, %v549
    %v569 = vadd.f32 %v568, %v551
    %v570 = vadd.f32 %v569, %v553
    %v571 = vadd.f32 %v570, %v555
    %v572 = vadd.f32 %v571, %v557
    %v573 = vrot.slane %v572, 4
    %v574 = vadd.f32 %v572, %v573
    %v575 = vrot.slane %v574, 2
    %v576 = vadd.f32 %v574, %v575
    %v577 = vrot.slane %v576, 1
    %v578 = vadd.f32 %v576, %v577
    %v579 = vlog2.pop %v578
    %v580 = vmul.f32 %v579, 0.6931472
    %v581 = vadd.f32 %v509, %v580
    %v582 = vlaneseq
    %v583 = vshrl.u32 %v582, 7
    %v584 = vsub.s32 0, %v583
    %v585 = vrot.slane %v32, %v584
    %vm586 = vcmp.eq.s32.totalorder %v34, %v585
    %vm587 = vcmp.eq.s32.totalorder %v35, %v585
    %vm588 = vcmp.eq.s32.totalorder %v36, %v585
    %vm589 = vcmp.eq.s32.totalorder %v37, %v585
    %vm590 = vcmp.eq.s32.totalorder %v38, %v585
    %vm591 = vcmp.eq.s32.totalorder %v39, %v585
    %vm592 = vcmp.eq.s32.totalorder %v40, %v585
    %vm593 = vcmp.eq.s32.totalorder %v41, %v585
    %vm594 = vcmp.eq.s32.totalorder %v42, %v585
    %vm595 = vcmp.eq.s32.totalorder %v43, %v585
    %vm596 = vcmp.eq.s32.totalorder %v44, %v585
    %vm597 = vcmp.eq.s32.totalorder %v45, %v585
    %vm598 = vcmp.eq.s32.totalorder %v46, %v585
    %vm599 = vcmp.eq.s32.totalorder %v47, %v585
    %vm600 = vcmp.eq.s32.totalorder %v48, %v585
    %vm601 = vcmp.eq.s32.totalorder %v49, %v585
    %v602 = vsel %vm586, %v411, 0.0
    %v603 = vsel %vm587, %v416, 0.0
    %v604 = vsel %vm588, %v421, 0.0
    %v605 = vsel %vm589, %v426, 0.0
    %v606 = vsel %vm590, %v431, 0.0
    %v607 = vsel %vm591, %v436, 0.0
    %v608 = vsel %vm592, %v441, 0.0
    %v609 = vsel %vm593, %v446, 0.0
    %v610 = vsel %vm594, %v451, 0.0
    %v611 = vsel %vm595, %v456, 0.0
    %v612 = vsel %vm596, %v461, 0.0
    %v613 = vsel %vm597, %v466, 0.0
    %v614 = vsel %vm598, %v471, 0.0
    %v615 = vsel %vm599, %v476, 0.0
    %v616 = vsel %vm600, %v481, 0.0
    %v617 = vsel %vm601, %v486, 0.0
    %v618 = vadd.f32 %v602, %v603
    %v619 = vadd.f32 %v618, %v604
    %v620 = vadd.f32 %v619, %v605
    %v621 = vadd.f32 %v620, %v606
    %v622 = vadd.f32 %v621, %v607
    %v623 = vadd.f32 %v622, %v608
    %v624 = vadd.f32 %v623, %v609
    %v625 = vadd.f32 %v624, %v610
    %v626 = vadd.f32 %v625, %v611
    %v627 = vadd.f32 %v626, %v612
    %v628 = vadd.f32 %v627, %v613
    %v629 = vadd.f32 %v628, %v614
    %v630 = vadd.f32 %v629, %v615
    %v631 = vadd.f32 %v630, %v616
    %v632 = vadd.f32 %v631, %v617
    %v633 = vrot.slane %v632, 4
    %v634 = vadd.f32 %v632, %v633
    %v635 = vrot.slane %v634, 2
    %v636 = vadd.f32 %v634, %v635
    %v637 = vrot.slane %v636, 1
    %v638 = vadd.f32 %v636, %v637
    %vm639 = vcmp.ge.s32.totalorder %v32, 0
    %v640 = vsub.f32 %v581, %v638
    %v641 = vsel %vm639, %v640, 0.0
    %vm642 = vcmask 1040384
    %v643 = vsel %vm642, %v641, 0.0
    %644 = vadd.xlane.f32.xlu0 %v643
    %v645 = vpop.xlane.xlu0 %644
    %v646 = vrot.slane %v645, 4
    %v647 = vadd.f32 %v645, %v646
    %v648 = vrot.slane %v647, 2
    %v649 = vadd.f32 %v647, %v648
    %v650 = vrot.slane %v649, 1
    %v651 = vadd.f32 %v649, %v650
    %s652 = vtos %v651
    %s653 = scalar_lea.smem [#allocation5], 0
    %654 = sst [smem:[%s653]] %s652
    // Predicated region
    $region18: #{_forward_with_loss.1} parent=1 // pred_check
      _
    $region19: #{_forward_with_loss.1} parent=1 // pred_check_branch
      %656 = sbr.rel (0) target = $region21
    $region20: #{_forward_with_loss.1} parent=1 // pred_region
      _
    $region21: #{_forward_with_loss.1} parent=1 // pred_fallthru
      _
    // Predicated region
    $region22: #{_forward_with_loss.1} parent=1 // pred_check
      _
    $region23: #{_forward_with_loss.1} parent=1 // pred_check_branch
      %658 = sbr.rel (0) target = $region25
    $region24: #{_forward_with_loss.1} parent=1 // pred_region
      %s660 = ssub.s32 16, 16
      %661 = vsyncadd [#allocation4], %s660
      %664 = dma.smem_to_hbm [#allocation5], 16, %s4, [#allocation4]
    $region25: #{_forward_with_loss.1} parent=1 // pred_fallthru
      _
    // Predicated region
    $region26: #{_forward_with_loss.1} parent=1 // pred_check
      _
    $region27: #{_forward_with_loss.1} parent=1 // pred_check_branch
      %666 = sbr.rel (0) target = $region29
    $region28: #{_forward_with_loss.1} parent=1 // pred_region
      _
    $region29: #{_forward_with_loss.1} parent=1 // pred_fallthru
      _
    // Predicated region
    $region30: #{_forward_with_loss.1} parent=1 // pred_check
      _
    $region31: #{_forward_with_loss.1} parent=1 // pred_check_branch
      %668 = sbr.rel (0) target = $region33
    $region32: #{_forward_with_loss.1} parent=1 // pred_region
      %669 = dma.done [#allocation4], 16
    $region33: #{_forward_with_loss.1} parent=1 // pred_fallthru
      _
    %670 = sfence
    %671 = vsyncpa [#allocation3], 1
    %672 = vsyncpa [#allocation4], 1

</llo_original>
